<compile_context>
chip_gen: v7x
topology: tpu7x:2x2x1
jax: 0.10.0
libtpu: 0.0.40
codegen_flags: <defaults>
</compile_context>

<pallas_src>
import functools
import math
from typing import NamedTuple

import jax
import jax.numpy as jnp
from jax.experimental import pallas as pl
from jax.experimental.pallas import tpu as pltpu


def _round_up(x: int, m: int) -> int:
    return ((x + m - 1) // m) * m


def _mlinear_kernel(bias_ref, self_ref, label_ref, vec_ref, wfa_ref, wfb_ref,
                    gamma_ref, beta_ref, out_ref,
                    *, ln_eps: float, h_valid: int, approx_gelu: bool):
    x = self_ref[...].astype(jnp.float32)      # (Bt, L, Hp)
    y = label_ref[...].astype(jnp.float32)     # (Bt, L, Hp)
    bt, lnum, hp = x.shape
    m = bt * lnum

    # Scalar biases from SMEM.
    b1 = bias_ref[0]
    b2 = bias_ref[1]
    bo = bias_ref[2]

    # Per-lane parameter vectors packed into one (4, Hp) VMEM block.
    vecs = vec_ref[...]                        # (4, Hp) f32

    def row(i):
        return vecs[i:i + 1].reshape(1, 1, hp)

    w1, w2, bf, wo = row(0), row(1), row(2), row(3)

    # ---- gating factors --------------------------------------------------
    s1 = jnp.sum(x * w1, axis=-1, keepdims=True) + b1      # (Bt, L, 1)
    s2 = jnp.sum(y * w2, axis=-1, keepdims=True) + b2
    f1 = jax.nn.sigmoid(s1)
    f2 = jax.nn.sigmoid(s2)
    f1 = f1 / (f1 + f2)
    f2 = 1.0 - f1

    # ---- fusion_linear: cat(f1*x, f2*y) @ Wf.T + bf -----------------------
    # Wf (H, 2H) was pre-split + pre-transposed + bf16-cast in prepare_params;
    # the concat is folded into two bf16 MXU matmuls (M = Bt*L rows) with f32
    # accumulation.
    out1 = (f1 * x).reshape(m, hp).astype(jnp.bfloat16)
    out2 = (f2 * y).reshape(m, hp).astype(jnp.bfloat16)
    fused = (jnp.dot(out1, wfa_ref[...], preferred_element_type=jnp.float32)
             + jnp.dot(out2, wfb_ref[...], preferred_element_type=jnp.float32))
    fused = fused.reshape(bt, lnum, hp) + bf                # (Bt, L, Hp)

    # ---- dropout (p=0.5) ---------------------------------------------------
    # TODO(synk): training-mode dropout not implemented; eval mode => identity.

    # ---- LayerNorm over [label_num, hidden_size], per batch element --------
    # Padded lanes (>= h_valid) are masked out of the statistics.
    n = jnp.float32(lnum * h_valid)
    if h_valid != hp:
        lane = jax.lax.broadcasted_iota(jnp.int32, (1, 1, hp), 2)
        mask = (lane < h_valid).astype(jnp.float32)
        fm = fused * mask
    else:
        mask = None
        fm = fused
    mean = jnp.sum(jnp.sum(fm, axis=-1, keepdims=True),
                   axis=-2, keepdims=True) / n              # (Bt, 1, 1)
    cent = fused - mean
    if mask is not None:
        cent = cent * mask
    var = jnp.sum(jnp.sum(cent * cent, axis=-1, keepdims=True),
                  axis=-2, keepdims=True) / n               # (Bt, 1, 1)
    gamma = gamma_ref[...].reshape(1, lnum, hp)
    beta = beta_ref[...].reshape(1, lnum, hp)
    normed = cent * jax.lax.rsqrt(var + ln_eps) * gamma + beta

    # ---- GELU --------------------------------------------------------------
    if approx_gelu:                     # tanh form -> EUP slot (v6e/v7x option)
        g = jax.nn.gelu(normed, approximate=True)
    else:                               # exact erf form (matches F.gelu default)
        g = 0.5 * normed * (1.0 + jax.lax.erf(normed * 0.7071067811865475))

    # ---- out_linear: (Bt, L, Hp) -> (Bt, L) (lane-dense store, no size-1) ---
    out = jnp.sum(g * wo, axis=-1) + bo                     # (Bt, L)
    out_ref[0] = out.astype(out_ref.dtype)


class MLinearParams(NamedTuple):
    """Kernel-ready parameters (built once by prepare_params)."""
    biases: jax.Array   # (3,)      f32  [b1, b2, bo] -> SMEM
    vecs:   jax.Array   # (4, Hp)   f32  rows [w1, w2, bf, wo]
    wfa_t:  jax.Array   # (Hp, Hp)  bf16 = pad(wf[:, :H].T)
    wfb_t:  jax.Array   # (Hp, Hp)  bf16 = pad(wf[:, H:].T)
    gamma:  jax.Array   # (L, Hp)   f32
    beta:   jax.Array   # (L, Hp)   f32
    hidden: int         # unpadded H


def prepare_params(params) -> MLinearParams:
    """One-time glue: split/transpose/pad/bf16-cast the torch-layout params.

    Hoisted out of the per-call path so the HxH transposed copies and casts
    are not re-materialized on every forward call.
    """
    (w1, b1, w2, b2, wf, bf, gamma, beta, wo, bo) = params
    h = gamma.shape[-1]
    hp = _round_up(h, 128)
    pad = hp - h

    vecs = jnp.stack([w1.reshape(h), w2.reshape(h),
                      bf.reshape(h), wo.reshape(h)], axis=0).astype(jnp.float32)
    vecs = jnp.pad(vecs, ((0, 0), (0, pad)))

    wfa_t = jnp.pad(wf[:, :h].T, ((0, pad), (0, pad))).astype(jnp.bfloat16)
    wfb_t = jnp.pad(wf[:, h:].T, ((0, pad), (0, pad))).astype(jnp.bfloat16)

    gamma_p = jnp.pad(gamma.astype(jnp.float32), ((0, 0), (0, pad)))
    beta_p = jnp.pad(beta.astype(jnp.float32), ((0, 0), (0, pad)))

    biases = jnp.stack([b1.reshape(()), b2.reshape(()),
                        bo.reshape(())]).astype(jnp.float32)
    return MLinearParams(biases, vecs, wfa_t, wfb_t, gamma_p, beta_p, h)


def mlinear_forward(self_attn, label_attn, prepared: MLinearParams, *,
                    ln_eps: float = 1e-5,
                    approximate_gelu: bool = False,
                    single_buffer_weights: bool = False):
    """MLinear forward pass.  Returns (B, label_num) float32."""
    b, l, h = self_attn.shape
    assert h == prepared.hidden
    hp = prepared.vecs.shape[-1]

    # Lane-pad activations so the hidden dim is a multiple of 128 lanes.
    if hp != h:
        self_attn = jnp.pad(self_attn, ((0, 0), (0, 0), (0, hp - h)))
        label_attn = jnp.pad(label_attn, ((0, 0), (0, 0), (0, hp - h)))

    # Batch packing: aim for ~256 rows (Bt * L) per grid step so the fusion
    # matmuls see a useful MXU M dim while keeping multiple grid steps when
    # the batch is large enough (megacore sharding on v7x).
    rows_per_step = max(1, pl.cdiv(256, l))
    if rows_per_step >= b:
        n_tiles, bt = 1, b
    else:
        n_tiles = pl.cdiv(b, rows_per_step)
        bt = pl.cdiv(b, n_tiles)
    b_pad = n_tiles * bt
    if b_pad != b:
        self_attn = jnp.pad(self_attn, ((0, b_pad - b), (0, 0), (0, 0)))
        label_attn = jnp.pad(label_attn, ((0, b_pad - b), (0, 0), (0, 0)))

    def const_spec(shape):
        kwargs = {}
        if single_buffer_weights:
            # Constant index_map => block never changes; a single VMEM buffer
            # is enough (halves weight residency for very large H on v7x/v5e).
            kwargs["pipeline_mode"] = pl.Buffered(1)
        return pl.BlockSpec(shape, lambda i: (0,) * len(shape), **kwargs)

    kernel = functools.partial(_mlinear_kernel, ln_eps=ln_eps, h_valid=h,
                               approx_gelu=approximate_gelu)

    out3 = pl.pallas_call(
        kernel,
        out_shape=jax.ShapeDtypeStruct((n_tiles, bt, l), jnp.float32),
        grid_spec=pltpu.PrefetchScalarGridSpec(
            num_scalar_prefetch=0,
            grid=(n_tiles,),
            in_specs=[
                pl.BlockSpec(memory_space=pltpu.MemorySpace.SMEM),   # b1,b2,bo
                pl.BlockSpec((bt, l, hp), lambda i: (i, 0, 0)),      # self_attn
                pl.BlockSpec((bt, l, hp), lambda i: (i, 0, 0)),      # label_attn
                const_spec((4, hp)),                                 # w1/w2/bf/wo
                const_spec((hp, hp)),                                # wfA_T (bf16)
                const_spec((hp, hp)),                                # wfB_T (bf16)
                const_spec((l, hp)),                                 # ln gamma
                const_spec((l, hp)),                                 # ln beta
            ],
            out_specs=pl.BlockSpec((1, bt, l), lambda i: (i, 0, 0)),
        ),
        compiler_params=pltpu.CompilerParams(
            dimension_semantics=("parallel",),
            vmem_limit_bytes=64 * 1024 * 1024,
        ),
    )(prepared.biases, self_attn, label_attn, prepared.vecs,
      prepared.wfa_t, prepared.wfb_t, prepared.gamma, prepared.beta)

    return out3.reshape(b_pad, l)[:b]           # (B, label_num)


# ------------------------- parameter construction --------------------------
def init_params(key, hidden_size, label_num):
    def xavier(key, shape):
        fan_out, fan_in = shape
        bound = math.sqrt(6.0 / (fan_in + fan_out))
        return jax.random.uniform(key, shape, jnp.float32, -bound, bound)

    keys = jax.random.split(key, 8)
    H, L = hidden_size, label_num
    w1 = xavier(keys[0], (1, H))
    b1 = jax.random.uniform(keys[1], (1,), jnp.float32, -0.1, 0.1)
    w2 = xavier(keys[2], (1, H))
    b2 = jax.random.uniform(keys[3], (1,), jnp.float32, -0.1, 0.1)
    wf = xavier(keys[4], (H, 2 * H))
    bf = jax.random.uniform(keys[5], (H,), jnp.float32, -0.1, 0.1)
    gamma = jnp.ones((L, H), jnp.float32)
    beta = jnp.zeros((L, H), jnp.float32)
    wo = xavier(keys[6], (1, H))
    bo = jax.random.uniform(keys[7], (1,), jnp.float32, -0.1, 0.1)
    return (w1, b1, w2, b2, wf, bf, gamma, beta, wo, bo)


# ------------------------- pure-JAX reference -------------------------------
def mlinear_ref(self_attn, label_attn, params, *, ln_eps=1e-5):
    (w1, b1, w2, b2, wf, bf, gamma, beta, wo, bo) = params
    f1 = jax.nn.sigmoid(self_attn @ w1.T + b1)
    f2 = jax.nn.sigmoid(label_attn @ w2.T + b2)
    f1 = f1 / (f1 + f2)
    f2 = 1.0 - f1
    out = jnp.concatenate((f1 * self_attn, f2 * label_attn), axis=-1)
    out = out @ wf.T + bf
    mean = jnp.mean(out, axis=(-2, -1), keepdims=True)
    var = jnp.mean((out - mean) ** 2, axis=(-2, -1), keepdims=True)
    out = (out - mean) / jnp.sqrt(var + ln_eps) * gamma + beta
    out = jax.nn.gelu(out, approximate=False)
    out = out @ wo.T + bo
    return jnp.squeeze(out, -1)


if __name__ == "__main__":
    batch, label_num, hidden = 2, 8, 32
    key = jax.random.PRNGKey(0)
    k_self, k_label, k_params = jax.random.split(key, 3)

    self_attn = jax.random.normal(k_self, (batch, label_num, hidden), jnp.float32)
    label_attn = jax.random.normal(k_label, (batch, label_num, hidden), jnp.float32)
    params = init_params(k_params, hidden, label_num)
    prepared = prepare_params(params)          # one-time (hoisted) param prep

    out = mlinear_forward(self_attn, label_attn, prepared)
    out = jax.block_until_ready(out)

    ref = mlinear_ref(self_attn, label_attn, params)
    assert out.shape == (batch, label_num)
    # bf16 fusion matmul (f32 accumulation) => slightly looser tolerance.
    max_err = float(jnp.max(jnp.abs(out - ref)))
    assert jnp.allclose(out, ref, atol=5e-2, rtol=5e-2), max_err

    print("KERNEL_OK")
</pallas_src>

<mosaic_0001>
module attributes {stable_mosaic.version = 11 : i64} {
  func.func @_mlinear_kernel(%arg0: i32, %arg1: memref<3xf32, #tpu.memory_space<smem>>, %arg2: memref<2x8x128xf32, #tpu.memory_space<vmem>>, %arg3: memref<2x8x128xf32, #tpu.memory_space<vmem>>, %arg4: memref<4x128xf32, #tpu.memory_space<vmem>>, %arg5: memref<128x128xbf16, #tpu.memory_space<vmem>>, %arg6: memref<128x128xbf16, #tpu.memory_space<vmem>>, %arg7: memref<8x128xf32, #tpu.memory_space<vmem>>, %arg8: memref<8x128xf32, #tpu.memory_space<vmem>>, %arg9: memref<1x2x8xf32, #tpu.memory_space<vmem>>) attributes {dimension_semantics = [#tpu.dimension_semantics<parallel>], iteration_bounds = array<i64: 1>, scalar_prefetch = 0 : i64, scratch_operands = 0 : i64, tpu.core_type = #tpu.core_type<tc>, window_params = [{transform_indices = @transform_0, window_bounds = array<i64: 3>}, {transform_indices = @transform_1, window_bounds = array<i64: 2, 8, 128>}, {transform_indices = @transform_2, window_bounds = array<i64: 2, 8, 128>}, {pipeline_mode = #tpu.pipeline_mode<synchronous>, transform_indices = @transform_3, window_bounds = array<i64: 4, 128>}, {pipeline_mode = #tpu.pipeline_mode<synchronous>, transform_indices = @transform_4, window_bounds = array<i64: 128, 128>}, {pipeline_mode = #tpu.pipeline_mode<synchronous>, transform_indices = @transform_5, window_bounds = array<i64: 128, 128>}, {pipeline_mode = #tpu.pipeline_mode<synchronous>, transform_indices = @transform_6, window_bounds = array<i64: 8, 128>}, {pipeline_mode = #tpu.pipeline_mode<synchronous>, transform_indices = @transform_7, window_bounds = array<i64: 8, 128>}, {transform_indices = @transform_8, window_bounds = array<i64: 1, 2, 8>}]} {
    %c0 = arith.constant 0 : index
    %c0_0 = arith.constant 0 : index
    %c0_1 = arith.constant 0 : index
    %0 = vector.load %arg2[%c0, %c0_0, %c0_1] : memref<2x8x128xf32, #tpu.memory_space<vmem>>, vector<2x8x128xf32>
    %c0_2 = arith.constant 0 : index
    %c0_3 = arith.constant 0 : index
    %c0_4 = arith.constant 0 : index
    %1 = vector.load %arg3[%c0_2, %c0_3, %c0_4] : memref<2x8x128xf32, #tpu.memory_space<vmem>>, vector<2x8x128xf32>
    %c0_5 = arith.constant 0 : index
    %2 = memref.load %arg1[%c0_5] : memref<3xf32, #tpu.memory_space<smem>>
    %c1 = arith.constant 1 : index
    %3 = memref.load %arg1[%c1] : memref<3xf32, #tpu.memory_space<smem>>
    %c2 = arith.constant 2 : index
    %4 = memref.load %arg1[%c2] : memref<3xf32, #tpu.memory_space<smem>>
    %c0_6 = arith.constant 0 : index
    %c0_7 = arith.constant 0 : index
    %5 = vector.load %arg4[%c0_6, %c0_7] : memref<4x128xf32, #tpu.memory_space<vmem>>, vector<4x128xf32>
    %6 = vector.extract_strided_slice %5 {offsets = [0, 0], sizes = [1, 128], strides = [1, 1]} : vector<4x128xf32> to vector<1x128xf32>
    %7 = vector.shape_cast %6 : vector<1x128xf32> to vector<1x1x128xf32>
    %8 = vector.extract_strided_slice %5 {offsets = [1, 0], sizes = [1, 128], strides = [1, 1]} : vector<4x128xf32> to vector<1x128xf32>
    %9 = vector.shape_cast %8 : vector<1x128xf32> to vector<1x1x128xf32>
    %10 = vector.extract_strided_slice %5 {offsets = [2, 0], sizes = [1, 128], strides = [1, 1]} : vector<4x128xf32> to vector<1x128xf32>
    %11 = vector.shape_cast %10 : vector<1x128xf32> to vector<1x1x128xf32>
    %12 = vector.extract_strided_slice %5 {offsets = [3, 0], sizes = [1, 128], strides = [1, 1]} : vector<4x128xf32> to vector<1x128xf32>
    %13 = vector.shape_cast %12 : vector<1x128xf32> to vector<1x1x128xf32>
    %14 = vector.broadcast %7 : vector<1x1x128xf32> to vector<2x8x128xf32>
    %15 = arith.mulf %0, %14 : vector<2x8x128xf32>
    %cst = arith.constant dense<0.000000e+00> : vector<2x8xf32>
    %16 = vector.multi_reduction <add>, %15, %cst [2] : vector<2x8x128xf32> to vector<2x8xf32>
    %17 = vector.shape_cast %16 : vector<2x8xf32> to vector<2x8x1xf32>
    %18 = vector.broadcast %2 : f32 to vector<2x8x1xf32>
    %19 = arith.addf %17, %18 : vector<2x8x1xf32>
    %20 = vector.broadcast %9 : vector<1x1x128xf32> to vector<2x8x128xf32>
    %21 = arith.mulf %1, %20 : vector<2x8x128xf32>
    %cst_8 = arith.constant dense<0.000000e+00> : vector<2x8xf32>
    %22 = vector.multi_reduction <add>, %21, %cst_8 [2] : vector<2x8x128xf32> to vector<2x8xf32>
    %23 = vector.shape_cast %22 : vector<2x8xf32> to vector<2x8x1xf32>
    %24 = vector.broadcast %3 : f32 to vector<2x8x1xf32>
    %25 = arith.addf %23, %24 : vector<2x8x1xf32>
    %26 = arith.negf %19 : vector<2x8x1xf32>
    %27 = math.exp %26 : vector<2x8x1xf32>
    %cst_9 = arith.constant 1.000000e+00 : f32
    %28 = vector.broadcast %cst_9 : f32 to vector<2x8x1xf32>
    %29 = arith.addf %28, %27 : vector<2x8x1xf32>
    %30 = arith.divf %28, %29 : vector<2x8x1xf32>
    %31 = arith.negf %25 : vector<2x8x1xf32>
    %32 = math.exp %31 : vector<2x8x1xf32>
    %cst_10 = arith.constant 1.000000e+00 : f32
    %33 = vector.broadcast %cst_10 : f32 to vector<2x8x1xf32>
    %34 = arith.addf %33, %32 : vector<2x8x1xf32>
    %35 = arith.divf %33, %34 : vector<2x8x1xf32>
    %36 = arith.addf %30, %35 : vector<2x8x1xf32>
    %37 = arith.divf %30, %36 : vector<2x8x1xf32>
    %cst_11 = arith.constant 1.000000e+00 : f32
    %38 = vector.broadcast %cst_11 : f32 to vector<2x8x1xf32>
    %39 = arith.subf %38, %37 : vector<2x8x1xf32>
    %40 = vector.broadcast %37 : vector<2x8x1xf32> to vector<2x8x128xf32>
    %41 = arith.mulf %40, %0 : vector<2x8x128xf32>
    %42 = vector.shape_cast %41 : vector<2x8x128xf32> to vector<16x128xf32>
    %43 = arith.truncf %42 : vector<16x128xf32> to vector<16x128xbf16>
    %44 = vector.broadcast %39 : vector<2x8x1xf32> to vector<2x8x128xf32>
    %45 = arith.mulf %44, %1 : vector<2x8x128xf32>
    %46 = vector.shape_cast %45 : vector<2x8x128xf32> to vector<16x128xf32>
    %47 = arith.truncf %46 : vector<16x128xf32> to vector<16x128xbf16>
    %c0_12 = arith.constant 0 : index
    %c0_13 = arith.constant 0 : index
    %48 = vector.load %arg5[%c0_12, %c0_13] : memref<128x128xbf16, #tpu.memory_space<vmem>>, vector<128x128xbf16>
    %cst_14 = arith.constant dense<0.000000e+00> : vector<16x128xf32>
    %49 = tpu.matmul %43, %48, %cst_14 {dimension_numbers = #tpu.dot_dimension_numbers<[1], [0], [0], [1], [0, 0, 1, 1], [], []>} : vector<16x128xbf16>, vector<128x128xbf16>, vector<16x128xf32> -> vector<16x128xf32>
    %c0_15 = arith.constant 0 : index
    %c0_16 = arith.constant 0 : index
    %50 = vector.load %arg6[%c0_15, %c0_16] : memref<128x128xbf16, #tpu.memory_space<vmem>>, vector<128x128xbf16>
    %cst_17 = arith.constant dense<0.000000e+00> : vector<16x128xf32>
    %51 = tpu.matmul %47, %50, %cst_17 {dimension_numbers = #tpu.dot_dimension_numbers<[1], [0], [0], [1], [0, 0, 1, 1], [], []>} : vector<16x128xbf16>, vector<128x128xbf16>, vector<16x128xf32> -> vector<16x128xf32>
    %52 = arith.addf %49, %51 : vector<16x128xf32>
    %53 = vector.shape_cast %52 : vector<16x128xf32> to vector<2x8x128xf32>
    %54 = vector.broadcast %11 : vector<1x1x128xf32> to vector<2x8x128xf32>
    %55 = arith.addf %53, %54 : vector<2x8x128xf32>
    %56 = tpu.iota {dimensions = array<i32: 2>} : vector<1x1x128xi32>
    %c32_i32 = arith.constant 32 : i32
    %57 = vector.broadcast %c32_i32 : i32 to vector<1x1x128xi32>
    %58 = arith.cmpi slt, %56, %57 : vector<1x1x128xi32>
    %59 = arith.extui %58 : vector<1x1x128xi1> to vector<1x1x128xi32>
    %60 = arith.sitofp %59 : vector<1x1x128xi32> to vector<1x1x128xf32>
    %61 = vector.broadcast %60 : vector<1x1x128xf32> to vector<2x8x128xf32>
    %62 = arith.mulf %55, %61 : vector<2x8x128xf32>
    %cst_18 = arith.constant dense<0.000000e+00> : vector<2x8xf32>
    %63 = vector.multi_reduction <add>, %62, %cst_18 [2] : vector<2x8x128xf32> to vector<2x8xf32>
    %64 = vector.shape_cast %63 : vector<2x8xf32> to vector<2x8x1xf32>
    %cst_19 = arith.constant dense<0.000000e+00> : vector<2x1xf32>
    %65 = vector.multi_reduction <add>, %64, %cst_19 [1] : vector<2x8x1xf32> to vector<2x1xf32>
    %66 = vector.shape_cast %65 : vector<2x1xf32> to vector<2x1x1xf32>
    %cst_20 = arith.constant 2.560000e+02 : f32
    %67 = vector.broadcast %cst_20 : f32 to vector<2x1x1xf32>
    %68 = arith.divf %66, %67 : vector<2x1x1xf32>
    %69 = vector.broadcast %68 : vector<2x1x1xf32> to vector<2x8x128xf32>
    %70 = arith.subf %55, %69 : vector<2x8x128xf32>
    %71 = vector.broadcast %60 : vector<1x1x128xf32> to vector<2x8x128xf32>
    %72 = arith.mulf %70, %71 : vector<2x8x128xf32>
    %73 = arith.mulf %72, %72 : vector<2x8x128xf32>
    %cst_21 = arith.constant dense<0.000000e+00> : vector<2x8xf32>
    %74 = vector.multi_reduction <add>, %73, %cst_21 [2] : vector<2x8x128xf32> to vector<2x8xf32>
    %75 = vector.shape_cast %74 : vector<2x8xf32> to vector<2x8x1xf32>
    %cst_22 = arith.constant dense<0.000000e+00> : vector<2x1xf32>
    %76 = vector.multi_reduction <add>, %75, %cst_22 [1] : vector<2x8x1xf32> to vector<2x1xf32>
    %77 = vector.shape_cast %76 : vector<2x1xf32> to vector<2x1x1xf32>
    %cst_23 = arith.constant 2.560000e+02 : f32
    %78 = vector.broadcast %cst_23 : f32 to vector<2x1x1xf32>
    %79 = arith.divf %77, %78 : vector<2x1x1xf32>
    %c0_24 = arith.constant 0 : index
    %c0_25 = arith.constant 0 : index
    %80 = vector.load %arg7[%c0_24, %c0_25] : memref<8x128xf32, #tpu.memory_space<vmem>>, vector<8x128xf32>
    %81 = vector.shape_cast %80 : vector<8x128xf32> to vector<1x8x128xf32>
    %c0_26 = arith.constant 0 : index
    %c0_27 = arith.constant 0 : index
    %82 = vector.load %arg8[%c0_26, %c0_27] : memref<8x128xf32, #tpu.memory_space<vmem>>, vector<8x128xf32>
    %83 = vector.shape_cast %82 : vector<8x128xf32> to vector<1x8x128xf32>
    %cst_28 = arith.constant 9.99999974E-6 : f32
    %84 = vector.broadcast %cst_28 : f32 to vector<2x1x1xf32>
    %85 = arith.addf %79, %84 : vector<2x1x1xf32>
    %86 = math.rsqrt %85 : vector<2x1x1xf32>
    %87 = vector.broadcast %86 : vector<2x1x1xf32> to vector<2x8x128xf32>
    %88 = arith.mulf %72, %87 : vector<2x8x128xf32>
    %89 = vector.broadcast %81 : vector<1x8x128xf32> to vector<2x8x128xf32>
    %90 = arith.mulf %88, %89 : vector<2x8x128xf32>
    %91 = vector.broadcast %83 : vector<1x8x128xf32> to vector<2x8x128xf32>
    %92 = arith.addf %90, %91 : vector<2x8x128xf32>
    %cst_29 = arith.constant 5.000000e-01 : f32
    %93 = vector.broadcast %cst_29 : f32 to vector<2x8x128xf32>
    %94 = arith.mulf %93, %92 : vector<2x8x128xf32>
    %cst_30 = arith.constant 0.707106769 : f32
    %95 = vector.broadcast %cst_30 : f32 to vector<2x8x128xf32>
    %96 = arith.mulf %92, %95 : vector<2x8x128xf32>
    %97 = math.erf %96 : vector<2x8x128xf32>
    %cst_31 = arith.constant 1.000000e+00 : f32
    %98 = vector.broadcast %cst_31 : f32 to vector<2x8x128xf32>
    %99 = arith.addf %98, %97 : vector<2x8x128xf32>
    %100 = arith.mulf %94, %99 : vector<2x8x128xf32>
    %101 = vector.broadcast %13 : vector<1x1x128xf32> to vector<2x8x128xf32>
    %102 = arith.mulf %100, %101 : vector<2x8x128xf32>
    %cst_32 = arith.constant dense<0.000000e+00> : vector<2x8xf32>
    %103 = vector.multi_reduction <add>, %102, %cst_32 [2] : vector<2x8x128xf32> to vector<2x8xf32>
    %104 = vector.broadcast %4 : f32 to vector<2x8xf32>
    %105 = arith.addf %103, %104 : vector<2x8xf32>
    %c0_33 = arith.constant 0 : index
    %c0_34 = arith.constant 0 : index
    %c0_35 = arith.constant 0 : index
    %106 = vector.load %arg9[%c0_33, %c0_34, %c0_35] : memref<1x2x8xf32, #tpu.memory_space<vmem>>, vector<1x2x8xf32>
    %107 = vector.shape_cast %106 : vector<1x2x8xf32> to vector<2x8xf32>
    %108 = vector.shape_cast %105 : vector<2x8xf32> to vector<1x2x8xf32>
    tpu.vector_store %arg9[%c0_33, %c0_34, %c0_35], %108 {strides = array<i32>} : memref<1x2x8xf32, #tpu.memory_space<vmem>>, vector<1x2x8xf32>,
    return
  }
  func.func @transform_0(%arg0: i32) -> i32 {
    %c0_i32 = arith.constant 0 : i32
    %c0_i32_0 = arith.constant 0 : i32
    return %c0_i32 : i32
  }
  func.func @transform_1(%arg0: i32) -> (i32, i32, i32) {
    %c0_i32 = arith.constant 0 : i32
    %c0_i32_0 = arith.constant 0 : i32
    %c0_i32_1 = arith.constant 0 : i32
    return %arg0, %c0_i32, %c0_i32_0 : i32, i32, i32
  }
  func.func @transform_2(%arg0: i32) -> (i32, i32, i32) {
    %c0_i32 = arith.constant 0 : i32
    %c0_i32_0 = arith.constant 0 : i32
    %c0_i32_1 = arith.constant 0 : i32
    return %arg0, %c0_i32, %c0_i32_0 : i32, i32, i32
  }
  func.func @transform_3(%arg0: i32) -> (i32, i32) {
    %c0_i32 = arith.constant 0 : i32
    %c0_i32_0 = arith.constant 0 : i32
    %c0_i32_1 = arith.constant 0 : i32
    return %c0_i32, %c0_i32_0 : i32, i32
  }
  func.func @transform_4(%arg0: i32) -> (i32, i32) {
    %c0_i32 = arith.constant 0 : i32
    %c0_i32_0 = arith.constant 0 : i32
    %c0_i32_1 = arith.constant 0 : i32
    return %c0_i32, %c0_i32_0 : i32, i32
  }
  func.func @transform_5(%arg0: i32) -> (i32, i32) {
    %c0_i32 = arith.constant 0 : i32
    %c0_i32_0 = arith.constant 0 : i32
    %c0_i32_1 = arith.constant 0 : i32
    return %c0_i32, %c0_i32_0 : i32, i32
  }
  func.func @transform_6(%arg0: i32) -> (i32, i32) {
    %c0_i32 = arith.constant 0 : i32
    %c0_i32_0 = arith.constant 0 : i32
    %c0_i32_1 = arith.constant 0 : i32
    return %c0_i32, %c0_i32_0 : i32, i32
  }
  func.func @transform_7(%arg0: i32) -> (i32, i32) {
    %c0_i32 = arith.constant 0 : i32
    %c0_i32_0 = arith.constant 0 : i32
    %c0_i32_1 = arith.constant 0 : i32
    return %c0_i32, %c0_i32_0 : i32, i32
  }
  func.func @transform_8(%arg0: i32) -> (i32, i32, i32) {
    %c0_i32 = arith.constant 0 : i32
    %c0_i32_0 = arith.constant 0 : i32
    %c0_i32_1 = arith.constant 0 : i32
    return %arg0, %c0_i32, %c0_i32_0 : i32, i32, i32
  }
}

</mosaic_0001>

<llo_original>
// kernel: tpu_custom_call.1
$region0: #{tpu_custom_call.1}
  #allocation0 [shape = 'u32[]', space=smem, size = 0x4, offset = 0x4, fixed_abs, tag = 'smem constant byte address 0x4 - core index']
  #allocation1 [shape = 'u32[144,128]{1,0:T(1,128)}', space=vmem, size = 0x12000, scoped, tag = 'internal scratch']
  %s0 = inlined_call_operand.hbm [shape: f32[3], index: 0, kind: input, shape index: {}]
  %s1 = inlined_call_operand.hbm [shape: f32[2,8,128], index: 1, kind: input, shape index: {}]
  %s2 = inlined_call_operand.hbm [shape: f32[2,8,128], index: 2, kind: input, shape index: {}]
  %s3 = inlined_call_operand.hbm [shape: f32[4,128], index: 3, kind: input, shape index: {}]
  %s4 = inlined_call_operand.hbm [shape: bf16[128,128], index: 4, kind: input, shape index: {}]
  %s5 = inlined_call_operand.hbm [shape: bf16[128,128], index: 5, kind: input, shape index: {}]
  %s6 = inlined_call_operand.hbm [shape: f32[8,128], index: 6, kind: input, shape index: {}]
  %s7 = inlined_call_operand.hbm [shape: f32[8,128], index: 7, kind: input, shape index: {}]
  %s8 = inlined_call_operand.hbm [shape: f32[1,2,8], index: 8, kind: output, shape index: {}]
  %s9 = sld [smem:[#allocation0]]
  $region74: #{tpu_custom_call.1} parent=0
    _
  %s11 = ssub.s32 1, %s9
  %s12 = scalar_select 0, %s11, %s9
  $region1: #{tpu_custom_call.1} parent=0
    #allocation2 [shape = 'u8[512]{0}', space=smem, size = 0x200, scoped, tag = 'input window, operand 0, single buffered']
    #allocation3 [shape = 's32[1]{0}', space=sflag, size = 0x4, scoped, tag = 'scoped memory for tpu_custom_call.1']
    #allocation4 [shape = 's32[1]{0}', space=sflag, size = 0x4, scoped, tag = 'scoped memory for tpu_custom_call.1']
    #allocation5 [shape = 's32[1]{0}', space=sflag, size = 0x4, scoped, tag = 'scoped memory for tpu_custom_call.1']
    #allocation6 [shape = 'u8[8192]{0}', space=vmem, size = 0x2000, scoped, tag = 'input window, operand 1, single buffered']
    #allocation7 [shape = 'u8[8192]{0}', space=vmem, size = 0x2000, scoped, tag = 'input window, operand 2, single buffered']
    #allocation8 [shape = 's32[1]{0}', space=sflag, size = 0x4, scoped, tag = 'scoped memory for tpu_custom_call.1']
    #allocation9 [shape = 'u8[2048]{0}', space=vmem, size = 0x800, scoped, tag = 'input window, operand 3, single buffered']
    #allocation10 [shape = 'u8[32768]{0}', space=vmem, size = 0x8000, scoped, tag = 'input window, operand 4, single buffered']
    #allocation11 [shape = 's32[1]{0}', space=sflag, size = 0x4, scoped, tag = 'scoped memory for tpu_custom_call.1']
    #allocation12 [shape = 'u8[32768]{0}', space=vmem, size = 0x8000, scoped, tag = 'input window, operand 5, single buffered']
    #allocation13 [shape = 'u8[4096]{0}', space=vmem, size = 0x1000, scoped, tag = 'input window, operand 6, single buffered']
    #allocation14 [shape = 's32[1]{0}', space=sflag, size = 0x4, scoped, tag = 'scoped memory for tpu_custom_call.1']
    #allocation15 [shape = 'u8[4096]{0}', space=vmem, size = 0x1000, scoped, tag = 'input window, operand 7, single buffered']
    #allocation16 [shape = 'u8[1024]{0}', space=vmem, size = 0x400, scoped, tag = 'output window, operand 0, single buffered']
    %13 = vsyncpa [#allocation5], 0
    %14 = vsyncpa [#allocation3], 0
    %15 = vsyncpa [#allocation8], 0
    %16 = vsyncpa [#allocation11], 0
    %17 = vsyncpa [#allocation14], 0
    %18 = vsyncpa [#allocation4], 0
    // Predicated region
    $region2: #{tpu_custom_call.1} parent=1 // pred_check
      _
    $region3: #{tpu_custom_call.1} parent=1 // pred_check_branch
      %20 = sbr.rel (0) target = $region5
    $region4: #{tpu_custom_call.1} parent=1 // pred_region
      %s22 = ssub.s32 16, 16
      %23 = vsyncadd [#allocation5], %s22
      %26 = dma.hbm_to_smem %s0, 16, [#allocation2], [#allocation5]
    $region5: #{tpu_custom_call.1} parent=1 // pred_fallthru
      _
    // Predicated region
    $region6: #{tpu_custom_call.1} parent=1 // pred_check
      _
    $region7: #{tpu_custom_call.1} parent=1 // pred_check_branch
      %28 = sbr.rel (0) target = $region9
    $region8: #{tpu_custom_call.1} parent=1 // pred_region
      %s30 = ssub.s32 256, 256
      %31 = vsyncadd [#allocation3], %s30
      %s32 = sshll.u32 [#allocation6], 4
      %s33 = int_to_ptr.vmem [resolvable:$true] %s32
      %38 = dma.hbm_to_vmem [thread:$0]  %s1, 256, %s33, [#allocation3], 128, 128, 8
    $region9: #{tpu_custom_call.1} parent=1 // pred_fallthru
      _
    // Predicated region
    $region10: #{tpu_custom_call.1} parent=1 // pred_check
      _
    $region11: #{tpu_custom_call.1} parent=1 // pred_check_branch
      %40 = sbr.rel (0) target = $region13
    $region12: #{tpu_custom_call.1} parent=1 // pred_region
      %s42 = ssub.s32 256, 256
      %43 = vsyncadd [#allocation8], %s42
      %s44 = sshll.u32 [#allocation7], 4
      %s45 = int_to_ptr.vmem [resolvable:$true] %s44
      %50 = dma.hbm_to_vmem [thread:$0]  %s2, 256, %s45, [#allocation8], 128, 128, 8
    $region13: #{tpu_custom_call.1} parent=1 // pred_fallthru
      _
    // Predicated region
    $region14: #{tpu_custom_call.1} parent=1 // pred_check
      _
    $region15: #{tpu_custom_call.1} parent=1 // pred_check_branch
      %52 = sbr.rel (0) target = $region17
    $region16: #{tpu_custom_call.1} parent=1 // pred_region
      %s54 = ssub.s32 64, 64
      %55 = vsyncadd [#allocation8], %s54
      %s57 = sshll.u32 [#allocation9], 4
      %s58 = int_to_ptr.vmem [resolvable:$true] %s57
      %60 = dma.hbm_to_vmem [thread:$0]  %s3, 64, %s58, [#allocation8]
    $region17: #{tpu_custom_call.1} parent=1 // pred_fallthru
      _
    // Predicated region
    $region18: #{tpu_custom_call.1} parent=1 // pred_check
      _
    $region19: #{tpu_custom_call.1} parent=1 // pred_check_branch
      %62 = sbr.rel (0) target = $region21
    $region20: #{tpu_custom_call.1} parent=1 // pred_region
      %s64 = ssub.s32 1024, 1024
      %65 = vsyncadd [#allocation11], %s64
      %s66 = sshll.u32 [#allocation10], 4
      %s67 = int_to_ptr.vmem [resolvable:$true] %s66
      %72 = dma.hbm_to_vmem [thread:$0]  %s4, 1024, %s67, [#allocation11], 64, 64, 4
    $region21: #{tpu_custom_call.1} parent=1 // pred_fallthru
      _
    // Predicated region
    $region22: #{tpu_custom_call.1} parent=1 // pred_check
      _
    $region23: #{tpu_custom_call.1} parent=1 // pred_check_branch
      %74 = sbr.rel (0) target = $region25
    $region24: #{tpu_custom_call.1} parent=1 // pred_region
      %s76 = ssub.s32 1024, 1024
      %77 = vsyncadd [#allocation11], %s76
      %s78 = sshll.u32 [#allocation12], 4
      %s79 = int_to_ptr.vmem [resolvable:$true] %s78
      %84 = dma.hbm_to_vmem [thread:$0]  %s5, 1024, %s79, [#allocation11], 64, 64, 4
    $region25: #{tpu_custom_call.1} parent=1 // pred_fallthru
      _
    // Predicated region
    $region26: #{tpu_custom_call.1} parent=1 // pred_check
      _
    $region27: #{tpu_custom_call.1} parent=1 // pred_check_branch
      %86 = sbr.rel (0) target = $region29
    $region28: #{tpu_custom_call.1} parent=1 // pred_region
      %s88 = ssub.s32 128, 128
      %89 = vsyncadd [#allocation14], %s88
      %s91 = sshll.u32 [#allocation13], 4
      %s92 = int_to_ptr.vmem [resolvable:$true] %s91
      %94 = dma.hbm_to_vmem [thread:$0]  %s6, 128, %s92, [#allocation14]
    $region29: #{tpu_custom_call.1} parent=1 // pred_fallthru
      _
    // Predicated region
    $region30: #{tpu_custom_call.1} parent=1 // pred_check
      _
    $region31: #{tpu_custom_call.1} parent=1 // pred_check_branch
      %96 = sbr.rel (0) target = $region33
    $region32: #{tpu_custom_call.1} parent=1 // pred_region
      %s98 = ssub.s32 128, 128
      %99 = vsyncadd [#allocation14], %s98
      %s101 = sshll.u32 [#allocation15], 4
      %s102 = int_to_ptr.vmem [resolvable:$true] %s101
      %104 = dma.hbm_to_vmem [thread:$0]  %s7, 128, %s102, [#allocation14]
    $region33: #{tpu_custom_call.1} parent=1 // pred_fallthru
      _
    // Predicated region
    $region34: #{tpu_custom_call.1} parent=1 // pred_check
      _
    $region35: #{tpu_custom_call.1} parent=1 // pred_check_branch
      %106 = sbr.rel (0) target = $region37
    $region36: #{tpu_custom_call.1} parent=1 // pred_region
      %107 = dma.done [#allocation5], 16
    $region37: #{tpu_custom_call.1} parent=1 // pred_fallthru
      _
    // Predicated region
    $region38: #{tpu_custom_call.1} parent=1 // pred_check
      _
    $region39: #{tpu_custom_call.1} parent=1 // pred_check_branch
      %109 = sbr.rel (0) target = $region41
    $region40: #{tpu_custom_call.1} parent=1 // pred_region
      %110 = dma.done [#allocation3], 256
    $region41: #{tpu_custom_call.1} parent=1 // pred_fallthru
      _
    // Predicated region
    $region42: #{tpu_custom_call.1} parent=1 // pred_check
      _
    $region43: #{tpu_custom_call.1} parent=1 // pred_check_branch
      %112 = sbr.rel (0) target = $region45
    $region44: #{tpu_custom_call.1} parent=1 // pred_region
      %113 = dma.done [#allocation8], 256
    $region45: #{tpu_custom_call.1} parent=1 // pred_fallthru
      _
    // Predicated region
    $region46: #{tpu_custom_call.1} parent=1 // pred_check
      _
    $region47: #{tpu_custom_call.1} parent=1 // pred_check_branch
      %115 = sbr.rel (0) target = $region49
    $region48: #{tpu_custom_call.1} parent=1 // pred_region
      %116 = dma.done [#allocation8], 64
    $region49: #{tpu_custom_call.1} parent=1 // pred_fallthru
      _
    // Predicated region
    $region50: #{tpu_custom_call.1} parent=1 // pred_check
      _
    $region51: #{tpu_custom_call.1} parent=1 // pred_check_branch
      %118 = sbr.rel (0) target = $region53
    $region52: #{tpu_custom_call.1} parent=1 // pred_region
      %119 = dma.done [#allocation11], 1024
    $region53: #{tpu_custom_call.1} parent=1 // pred_fallthru
      _
    // Predicated region
    $region54: #{tpu_custom_call.1} parent=1 // pred_check
      _
    $region55: #{tpu_custom_call.1} parent=1 // pred_check_branch
      %121 = sbr.rel (0) target = $region57
    $region56: #{tpu_custom_call.1} parent=1 // pred_region
      %122 = dma.done [#allocation11], 1024
    $region57: #{tpu_custom_call.1} parent=1 // pred_fallthru
      _
    // Predicated region
    $region58: #{tpu_custom_call.1} parent=1 // pred_check
      _
    $region59: #{tpu_custom_call.1} parent=1 // pred_check_branch
      %124 = sbr.rel (0) target = $region61
    $region60: #{tpu_custom_call.1} parent=1 // pred_region
      %125 = dma.done [#allocation14], 128
    $region61: #{tpu_custom_call.1} parent=1 // pred_fallthru
      _
    // Predicated region
    $region62: #{tpu_custom_call.1} parent=1 // pred_check
      _
    $region63: #{tpu_custom_call.1} parent=1 // pred_check_branch
      %127 = sbr.rel (0) target = $region65
    $region64: #{tpu_custom_call.1} parent=1 // pred_region
      %128 = dma.done [#allocation14], 128
    $region65: #{tpu_custom_call.1} parent=1 // pred_fallthru
      _
    %129 = sfence
    %v131 = vld [vmem:[#allocation6] sm:$0xff]
    %v132 = vld [vmem:[#allocation6 + $0x8] sm:$0xff]
    %v133 = vld [vmem:[#allocation7] sm:$0xff]
    %v134 = vld [vmem:[#allocation7 + $0x8] sm:$0xff]
    %s135 = sld [smem:[#allocation2]]
    %s136 = sld [smem:[#allocation2 + $0x1]]
    %s137 = sld [smem:[#allocation2 + $0x2]]
    %v138 = vld [vmem:[#allocation9] sm:$0xf]
    %v139 = vlaneseq
    %v140 = vshrl.u32 %v139, 7
    %v141 = vsub.s32 0, %v140
    %v142 = vrot.slane %v138, %v141
    %v143 = vmul.f32 %v131, %v142
    %v144 = vmul.f32 %v132, %v142
    %145 = vadd.xlane.f32.xlu0 %v143
    %v146 = vpop.xlane.xlu0 %145
    %147 = vadd.xlane.f32.xlu0 %v144
    %v148 = vpop.xlane.xlu0 %147
    %v149 = vstv %s135
    %v150 = vadd.f32 %v146, %v149
    %v151 = vadd.f32 %v148, %v149
    %v152 = vlaneseq
    %v153 = vshrl.u32 %v152, 7
    %v154 = vsub.s32 1, %v153
    %v155 = vrot.slane %v138, %v154
    %v156 = vmul.f32 %v133, %v155
    %v157 = vmul.f32 %v134, %v155
    %158 = vadd.xlane.f32.xlu0 %v156
    %v159 = vpop.xlane.xlu0 %158
    %160 = vadd.xlane.f32.xlu0 %v157
    %v161 = vpop.xlane.xlu0 %160
    %v162 = vstv %s136
    %v163 = vadd.f32 %v159, %v162
    %v164 = vadd.f32 %v161, %v162
    %v165 = vxor.u32 %v150, 2147483648
    %v166 = vxor.u32 %v151, 2147483648
    %v167 = vmul.f32 %v165, 1.442695
    %v168 = vpow.pop %v167
    %v169 = vmul.f32 %v166, 1.442695
    %v170 = vpow.pop %v169
    %v171 = vadd.f32 %v168, 1.0
    %v172 = vadd.f32 %v170, 1.0
    %v173 = vrcp.pop %v171
    %v174 = vmul.f32 1.0, %v173
    %v175 = vrcp.pop %v172
    %v176 = vmul.f32 1.0, %v175
    %v177 = vxor.u32 %v163, 2147483648
    %v178 = vxor.u32 %v164, 2147483648
    %v179 = vmul.f32 %v177, 1.442695
    %v180 = vpow.pop %v179
    %v181 = vmul.f32 %v178, 1.442695
    %v182 = vpow.pop %v181
    %v183 = vadd.f32 %v180, 1.0
    %v184 = vadd.f32 %v182, 1.0
    %v185 = vrcp.pop %v183
    %v186 = vmul.f32 1.0, %v185
    %v187 = vrcp.pop %v184
    %v188 = vmul.f32 1.0, %v187
    %v189 = vadd.f32 %v174, %v186
    %v190 = vadd.f32 %v176, %v188
    %v191 = vrcp.pop %v189
    %v192 = vmul.f32 %v174, %v191
    %v193 = vrcp.pop %v190
    %v194 = vmul.f32 %v176, %v193
    %v195 = vsub.f32 1.0, %v192
    %v196 = vsub.f32 1.0, %v194
    %v197 = vmul.f32 %v192, %v131
    %v198 = vmul.f32 %v194, %v132
    %v199 = vpack.c.bf16 %v198, %v197
    %v200 = vmul.f32 %v195, %v133
    %v201 = vmul.f32 %v196, %v134
    %v202 = vpack.c.bf16 %v201, %v200
    %v203 = vld [vmem:[#allocation10] sm:$0xf]
    %v204 = vld [vmem:[#allocation10 + $0x4] sm:$0xf]
    %v205 = vld [vmem:[#allocation10 + $0x8] sm:$0xf]
    %v206 = vld [vmem:[#allocation10 + $0xc] sm:$0xf]
    %v207 = vld [vmem:[#allocation10 + $0x10] sm:$0xf]
    %v208 = vld [vmem:[#allocation10 + $0x14] sm:$0xf]
    %v209 = vld [vmem:[#allocation10 + $0x18] sm:$0xf]
    %v210 = vld [vmem:[#allocation10 + $0x1c] sm:$0xf]
    %v211 = vld [vmem:[#allocation10 + $0x20] sm:$0xf]
    %v212 = vld [vmem:[#allocation10 + $0x24] sm:$0xf]
    %v213 = vld [vmem:[#allocation10 + $0x28] sm:$0xf]
    %v214 = vld [vmem:[#allocation10 + $0x2c] sm:$0xf]
    %v215 = vld [vmem:[#allocation10 + $0x30] sm:$0xf]
    %v216 = vld [vmem:[#allocation10 + $0x34] sm:$0xf]
    %v217 = vld [vmem:[#allocation10 + $0x38] sm:$0xf]
    %v218 = vld [vmem:[#allocation10 + $0x3c] sm:$0xf]
    %v219 = vld [vmem:[#allocation12] sm:$0xf]
    %v220 = vld [vmem:[#allocation12 + $0x4] sm:$0xf]
    %v221 = vld [vmem:[#allocation12 + $0x8] sm:$0xf]
    %v222 = vld [vmem:[#allocation12 + $0xc] sm:$0xf]
    %v223 = vld [vmem:[#allocation12 + $0x10] sm:$0xf]
    %v224 = vld [vmem:[#allocation12 + $0x14] sm:$0xf]
    %v225 = vld [vmem:[#allocation12 + $0x18] sm:$0xf]
    %v226 = vld [vmem:[#allocation12 + $0x1c] sm:$0xf]
    %v227 = vld [vmem:[#allocation12 + $0x20] sm:$0xf]
    %v228 = vld [vmem:[#allocation12 + $0x24] sm:$0xf]
    %v229 = vld [vmem:[#allocation12 + $0x28] sm:$0xf]
    %v230 = vld [vmem:[#allocation12 + $0x2c] sm:$0xf]
    %v231 = vld [vmem:[#allocation12 + $0x30] sm:$0xf]
    %v232 = vld [vmem:[#allocation12 + $0x34] sm:$0xf]
    %v233 = vld [vmem:[#allocation12 + $0x38] sm:$0xf]
    %v234 = vld [vmem:[#allocation12 + $0x3c] sm:$0xf]
    %v251 = vunpack.c.l.b16 %v219
    %v252 = vunpack.c.l.b16 %v220
    %v253 = vunpack.c.l.b16 %v221
    %v254 = vunpack.c.l.b16 %v222
    %v255 = vunpack.c.l.b16 %v223
    %v256 = vunpack.c.l.b16 %v224
    %v257 = vunpack.c.l.b16 %v225
    %v258 = vunpack.c.l.b16 %v226
    %v259 = vunpack.c.l.b16 %v227
    %v260 = vunpack.c.l.b16 %v228
    %v261 = vunpack.c.l.b16 %v229
    %v262 = vunpack.c.l.b16 %v230
    %v263 = vunpack.c.l.b16 %v231
    %v264 = vunpack.c.l.b16 %v232
    %v265 = vunpack.c.l.b16 %v233
    %v266 = vunpack.c.l.b16 %v234
    %v267 = vpack.c.b16 %v252, %v251
    %v268 = vpack.c.b16 %v254, %v253
    %v269 = vpack.c.b16 %v256, %v255
    %v270 = vpack.c.b16 %v258, %v257
    %v271 = vpack.c.b16 %v260, %v259
    %v272 = vpack.c.b16 %v262, %v261
    %v273 = vpack.c.b16 %v264, %v263
    %v274 = vpack.c.b16 %v266, %v265
    %283 = vmatprep.subr.bf16.mxu0 0
    %284 = vmatpush1.bf16.msra.mxu0 %v267
    %285 = vmatprep.subr.bf16.mxu0 0
    %286 = vmatpush1.bf16.msra.mxu0 %v268
    %287 = vmatprep.subr.bf16.mxu0 0
    %288 = vmatpush1.bf16.msra.mxu0 %v269
    %289 = vmatprep.subr.bf16.mxu0 0
    %290 = vmatpush1.bf16.msra.mxu0 %v270
    %291 = vmatprep.subr.bf16.mxu0 0
    %292 = vmatpush1.bf16.msra.mxu0 %v271
    %293 = vmatprep.subr.bf16.mxu0 0
    %294 = vmatpush1.bf16.msra.mxu0 %v272
    %295 = vmatprep.subr.bf16.mxu0 0
    %296 = vmatpush1.bf16.msra.mxu0 %v273
    %297 = vmatprep.subr.bf16.mxu0 0
    %298 = vmatpush1.bf16.msra.mxu0 %v274
    %299 = vmatprep.subr.bf16.mxu0 0
    %300 = vmatpush1.bf16.msra.mxu0 0
    %301 = vmatprep.subr.bf16.mxu0 0
    %302 = vmatpush1.bf16.msra.mxu0 0
    %303 = vmatprep.subr.bf16.mxu0 0
    %304 = vmatpush1.bf16.msra.mxu0 0
    %305 = vmatprep.subr.bf16.mxu0 0
    %306 = vmatpush1.bf16.msra.mxu0 0
    %307 = vmatprep.subr.bf16.mxu0 0
    %308 = vmatpush1.bf16.msra.mxu0 0
    %309 = vmatprep.subr.bf16.mxu0 0
    %310 = vmatpush1.bf16.msra.mxu0 0
    %311 = vmatprep.subr.bf16.mxu0 0
    %312 = vmatpush1.bf16.msra.mxu0 0
    %313 = vmatprep.subr.bf16.mxu0 0
    %314 = vmatpush1.bf16.msra.mxu0 0
    %315 = vmatprep.mubr.bf16.mxu0 0
    %316 = vmatmul.mubr.bf16.gmra.mrb[0].mxu0 %v202
    %v317 = vpop.f32.mrb[0].mxu0
    %v318 = vadd.f32 0.0, %v317
    %v319 = vpop.f32.mrb[0].mxu0
    %v320 = vpop.f32.mrb[0].mxu0
    %v321 = vadd.f32 0.0, %v320
    %v322 = vpop.f32.mrb[0].mxu0
    %323 = vdwg.mxu0
    %v340 = vunpack.c.l.b16 %v203
    %v341 = vunpack.c.l.b16 %v204
    %v342 = vunpack.c.l.b16 %v205
    %v343 = vunpack.c.l.b16 %v206
    %v344 = vunpack.c.l.b16 %v207
    %v345 = vunpack.c.l.b16 %v208
    %v346 = vunpack.c.l.b16 %v209
    %v347 = vunpack.c.l.b16 %v210
    %v348 = vunpack.c.l.b16 %v211
    %v349 = vunpack.c.l.b16 %v212
    %v350 = vunpack.c.l.b16 %v213
    %v351 = vunpack.c.l.b16 %v214
    %v352 = vunpack.c.l.b16 %v215
    %v353 = vunpack.c.l.b16 %v216
    %v354 = vunpack.c.l.b16 %v217
    %v355 = vunpack.c.l.b16 %v218
    %v356 = vpack.c.b16 %v341, %v340
    %v357 = vpack.c.b16 %v343, %v342
    %v358 = vpack.c.b16 %v345, %v344
    %v359 = vpack.c.b16 %v347, %v346
    %v360 = vpack.c.b16 %v349, %v348
    %v361 = vpack.c.b16 %v351, %v350
    %v362 = vpack.c.b16 %v353, %v352
    %v363 = vpack.c.b16 %v355, %v354
    %372 = vmatprep.subr.bf16.mxu0 0
    %373 = vmatpush1.bf16.msra.mxu0 %v356
    %374 = vmatprep.subr.bf16.mxu0 0
    %375 = vmatpush1.bf16.msra.mxu0 %v357
    %376 = vmatprep.subr.bf16.mxu0 0
    %377 = vmatpush1.bf16.msra.mxu0 %v358
    %378 = vmatprep.subr.bf16.mxu0 0
    %379 = vmatpush1.bf16.msra.mxu0 %v359
    %380 = vmatprep.subr.bf16.mxu0 0
    %381 = vmatpush1.bf16.msra.mxu0 %v360
    %382 = vmatprep.subr.bf16.mxu0 0
    %383 = vmatpush1.bf16.msra.mxu0 %v361
    %384 = vmatprep.subr.bf16.mxu0 0
    %385 = vmatpush1.bf16.msra.mxu0 %v362
    %386 = vmatprep.subr.bf16.mxu0 0
    %387 = vmatpush1.bf16.msra.mxu0 %v363
    %388 = vmatprep.subr.bf16.mxu0 0
    %389 = vmatpush1.bf16.msra.mxu0 0
    %390 = vmatprep.subr.bf16.mxu0 0
    %391 = vmatpush1.bf16.msra.mxu0 0
    %392 = vmatprep.subr.bf16.mxu0 0
    %393 = vmatpush1.bf16.msra.mxu0 0
    %394 = vmatprep.subr.bf16.mxu0 0
    %395 = vmatpush1.bf16.msra.mxu0 0
    %396 = vmatprep.subr.bf16.mxu0 0
    %397 = vmatpush1.bf16.msra.mxu0 0
    %398 = vmatprep.subr.bf16.mxu0 0
    %399 = vmatpush1.bf16.msra.mxu0 0
    %400 = vmatprep.subr.bf16.mxu0 0
    %401 = vmatpush1.bf16.msra.mxu0 0
    %402 = vmatprep.subr.bf16.mxu0 0
    %403 = vmatpush1.bf16.msra.mxu0 0
    %404 = vmatprep.mubr.bf16.mxu0 0
    %405 = vmatmul.mubr.bf16.gmra.mrb[0].mxu0 %v199
    %v406 = vpop.f32.mrb[0].mxu0
    %v407 = vadd.f32 %v318, %v406
    %v408 = vpop.f32.mrb[0].mxu0
    %v409 = vpop.f32.mrb[0].mxu0
    %v410 = vadd.f32 %v321, %v409
    %v411 = vpop.f32.mrb[0].mxu0
    %412 = vdwg.mxu0
    %v413 = vlaneseq
    %v414 = vshrl.u32 %v413, 7
    %v415 = vsub.s32 2, %v414
    %v416 = vrot.slane %v138, %v415
    %v417 = vadd.f32 %v407, %v416
    %v418 = vadd.f32 %v410, %v416
    %v419 = vlaneseq
    %v420 = vand.u32 %v419, 127
    %vm421 = vcmp.lt.s32.totalorder %v420, 32
    %v422 = vsel %vm421, 1, 0
    %v423 = vcvt.s32.f32 %v422
    %v424 = vmul.f32 %v417, %v423
    %v425 = vmul.f32 %v418, %v423
    %426 = vadd.xlane.f32.xlu0 %v424
    %v427 = vpop.xlane.xlu0 %426
    %428 = vadd.xlane.f32.xlu0 %v425
    %v429 = vpop.xlane.xlu0 %428
    %v430 = vrot.slane %v427, 4
    %v431 = vadd.f32 %v427, %v430
    %v432 = vrot.slane %v431, 2
    %v433 = vadd.f32 %v431, %v432
    %v434 = vrot.slane %v433, 1
    %v435 = vadd.f32 %v433, %v434
    %v436 = vrot.slane %v429, 4
    %v437 = vadd.f32 %v429, %v436
    %v438 = vrot.slane %v437, 2
    %v439 = vadd.f32 %v437, %v438
    %v440 = vrot.slane %v439, 1
    %v441 = vadd.f32 %v439, %v440
    %v442 = vrcp.pop 256.0
    %v443 = vmul.f32 %v435, %v442
    %v444 = vmul.f32 %v441, %v442
    %v445 = vsub.f32 %v417, %v443
    %v446 = vsub.f32 %v418, %v444
    %v447 = vmul.f32 %v445, %v423
    %v448 = vmul.f32 %v446, %v423
    %v449 = vmul.f32 %v447, %v447
    %v450 = vmul.f32 %v448, %v448
    %451 = vadd.xlane.f32.xlu0 %v449
    %v452 = vpop.xlane.xlu0 %451
    %453 = vadd.xlane.f32.xlu0 %v450
    %v454 = vpop.xlane.xlu0 %453
    %v455 = vrot.slane %v452, 4
    %v456 = vadd.f32 %v452, %v455
    %v457 = vrot.slane %v456, 2
    %v458 = vadd.f32 %v456, %v457
    %v459 = vrot.slane %v458, 1
    %v460 = vadd.f32 %v458, %v459
    %v461 = vrot.slane %v454, 4
    %v462 = vadd.f32 %v454, %v461
    %v463 = vrot.slane %v462, 2
    %v464 = vadd.f32 %v462, %v463
    %v465 = vrot.slane %v464, 1
    %v466 = vadd.f32 %v464, %v465
    %v467 = vmul.f32 %v460, %v442
    %v468 = vmul.f32 %v466, %v442
    %v469 = vld [vmem:[#allocation13] sm:$0xff]
    %v470 = vld [vmem:[#allocation15] sm:$0xff]
    %v471 = vadd.f32 %v467, 1e-05
    %v472 = vadd.f32 %v468, 1e-05
    %v473 = vrsqrt.pop %v471
    %v474 = vrsqrt.pop %v472
    %v475 = vmul.f32 %v447, %v473
    %v476 = vmul.f32 %v448, %v474
    %v477 = vmul.f32 %v475, %v469
    %v478 = vmul.f32 %v476, %v469
    %v479 = vadd.f32 %v477, %v470
    %v480 = vadd.f32 %v478, %v470
    %v481 = vmul.f32 %v479, 0.5
    %v482 = vmul.f32 %v480, 0.5
    %v483 = vmul.f32 %v479, 0.70710677
    %v484 = vmul.f32 %v480, 0.70710677
    %v485 = verf.f32.pop %v483
    %v486 = verf.f32.pop %v484
    %v487 = vadd.f32 %v485, 1.0
    %v488 = vadd.f32 %v486, 1.0
    %v489 = vmul.f32 %v481, %v487
    %v490 = vmul.f32 %v482, %v488
    %v491 = vlaneseq
    %v492 = vshrl.u32 %v491, 7
    %v493 = vsub.s32 3, %v492
    %v494 = vrot.slane %v138, %v493
    %v495 = vmul.f32 %v489, %v494
    %v496 = vmul.f32 %v490, %v494
    %497 = vadd.xlane.f32.xlu0 %v495
    %v498 = vpop.xlane.xlu0 %497
    %499 = vadd.xlane.f32.xlu0 %v496
    %v500 = vpop.xlane.xlu0 %499
    %v501 = vstv %s137
    %v502 = vadd.f32 %v498, %v501
    %v503 = vadd.f32 %v500, %v501
    %v506 = vlaneseq
    %v507 = vshrl.u32 %v506, 7
    %v508 = vsub.s32 %v420, %v507
    %v509 = vrot.slane %v502, %v508
    %v510 = vlaneseq
    %v511 = vshrl.u32 %v510, 7
    %v512 = vsub.s32 %v420, %v511
    %v513 = vrot.slane %v503, %v512
    %vm514 = vcmask 1041409
    %v515 = vsel %vm514, %v513, %v509
    %vm517 = vcmask 58368
    %518 = vst.msk [vmem:[#allocation16] sm:$0x3] %vm517, %v515
    // Predicated region
    $region66: #{tpu_custom_call.1} parent=1 // pred_check
      _
    $region67: #{tpu_custom_call.1} parent=1 // pred_check_branch
      %520 = sbr.rel (0) target = $region69
    $region68: #{tpu_custom_call.1} parent=1 // pred_region
      %s522 = ssub.s32 32, 32
      %523 = vsyncadd [#allocation4], %s522
      %s525 = sshll.u32 [#allocation16], 4
      %s526 = int_to_ptr.vmem [resolvable:$true] %s525
      %528 = dma.vmem_to_hbm [thread:$0]  %s526, 32, %s8, [#allocation4]
    $region69: #{tpu_custom_call.1} parent=1 // pred_fallthru
      _
    // Predicated region
    $region70: #{tpu_custom_call.1} parent=1 // pred_check
      _
    $region71: #{tpu_custom_call.1} parent=1 // pred_check_branch
      %530 = sbr.rel (0) target = $region73
    $region72: #{tpu_custom_call.1} parent=1 // pred_region
      %531 = dma.done [#allocation4], 32
    $region73: #{tpu_custom_call.1} parent=1 // pred_fallthru
      _
    %532 = vsyncpa [#allocation3], 1
    %533 = vsyncpa [#allocation8], 1
    %534 = vsyncpa [#allocation11], 1
    %535 = vsyncpa [#allocation14], 1
    %536 = vsyncpa [#allocation4], 1
    %537 = vsyncpa [#allocation5], 1

</llo_original>
